<compile_context>
chip_gen: v6e
topology: v6e:2x2x1
jax: 0.10.0
libtpu: 0.0.40
codegen_flags: <defaults>
</compile_context>

<pallas_src>
import functools
import math

import jax
import jax.numpy as jnp
from jax.experimental import pallas as pl
from jax.experimental.pallas import tpu as pltpu


def _cmm_forward_kernel(x_ref, w_ref, o_ref):
    # x_ref: (TM, K)   w_ref: (K, N)   o_ref: (TM, N)
    # Single MXU matmul per grid step, f32 accumulation on the MXU.
    o_ref[...] = jnp.dot(
        x_ref[...], w_ref[...], preferred_element_type=jnp.float32
    ).astype(o_ref.dtype)


def _round_up(v, mult):
    return ((v + mult - 1) // mult) * mult


@functools.partial(jax.jit, static_argnames=("tile_m", "compute_dtype"))
def correlation_matrix_memory_forward(x, weight, *, tile_m=1024, compute_dtype=None):
    """y = x @ weight  with weight of shape (out_features, in_features).

    x: (..., out_features)  ->  y: (..., in_features)

    compute_dtype: optional dtype (e.g. jnp.bfloat16) to cast x/weight to
    before the MXU matmul; accumulation stays in f32 and the output keeps
    x.dtype.
    """
    out_features, in_features = weight.shape
    assert x.shape[-1] == out_features, (
        f"input last dim {x.shape[-1]} must equal out_features {out_features}"
    )
    lead_shape = x.shape[:-1]
    out_dtype = x.dtype

    # Flatten leading dims into a single M axis.  No padding copy: the ragged
    # last M-block (if any) is handled by Pallas block masking.
    x2d = x.reshape(-1, out_features)
    if compute_dtype is not None:
        x2d = x2d.astype(compute_dtype)
        weight = weight.astype(compute_dtype)

    m = x2d.shape[0]
    k = out_features
    n = in_features

    x_item = jnp.dtype(x2d.dtype).itemsize
    w_item = jnp.dtype(weight.dtype).itemsize
    o_item = jnp.dtype(out_dtype).itemsize

    # Sublane granularity for the second-to-last block dim: 8 for 32-bit,
    # 16 for 16-bit (packed sublanes).
    sublane = 16 if x_item == 2 else 8

    # Pick the M tile: as large as requested (amortizes per-grid-step
    # overhead), but (a) no larger than M rounded up to the sublane multiple
    # (single grid step for small inputs) and (b) small enough that the
    # double-buffered x/y tiles plus the resident (double-buffered) weight
    # stay under a VMEM budget that is safe on v5e / v6e / v7x.
    vmem_budget = 24 << 20

    def _tiles_bytes(t):
        return 2 * t * (k * x_item + n * o_item) + 2 * k * n * w_item

    tm = min(_round_up(tile_m, sublane), _round_up(m, sublane))
    while tm > sublane and _tiles_bytes(tm) > vmem_budget:
        tm = _round_up(max(tm // 2, sublane), sublane)
    tm = max(tm, sublane)

    grid = (pl.cdiv(m, tm),)

    cost = pl.CostEstimate(
        flops=2 * m * k * n,
        transcendentals=0,
        bytes_accessed=m * k * x_item + k * n * w_item + m * n * o_item,
    )

    y2d = pl.pallas_call(
        _cmm_forward_kernel,
        out_shape=jax.ShapeDtypeStruct((m, n), out_dtype),
        grid_spec=pltpu.PrefetchScalarGridSpec(
            num_scalar_prefetch=0,
            grid=grid,
            in_specs=[
                # One M-tile of the input per grid step (K dim is full width).
                pl.BlockSpec((tm, k), lambda i: (i, 0)),
                # Full weight, constant block index -> DMA'd once and kept
                # resident in VMEM for every grid step (no re-fetch).
                pl.BlockSpec((k, n), lambda i: (0, 0)),
            ],
            out_specs=pl.BlockSpec((tm, n), lambda i: (i, 0)),
        ),
        compiler_params=pltpu.CompilerParams(
            # Independent M tiles -> shardable across TensorCores (v7x megacore).
            dimension_semantics=("parallel",),
            # Safe on all generations (v5e default scoped is only 16 MiB).
            vmem_limit_bytes=32 << 20,
        ),
        cost_estimate=cost,
    )(x2d, weight)

    return y2d.reshape(*lead_shape, n)


if __name__ == "__main__":
    # TODO(synk): memorize()/forget() are in-place parameter updates (simple
    # adds on the weight), handled outside this forward kernel.

    # Module config: CorrelationMatrixMemory(in_features=64, out_features=32)
    in_features = 64
    out_features = 32
    batch, seq = 2, 8

    key = jax.random.PRNGKey(0)
    k_x, k_w, k_r = jax.random.split(key, 3)

    # Input: (..., out_features) as required by forward (x @ weight).
    x = jax.random.normal(k_x, (batch, seq, out_features), dtype=jnp.float32)

    # Parameter shape from __init__: (out_features, in_features).
    # reset_parameters() zero-initializes it; use a deterministic random
    # weight so the matmul result is non-trivial to verify.
    weight = 0.02 * jax.random.normal(
        k_w, (out_features, in_features), dtype=jnp.float32
    )

    # f32 path (single grid step for this small M).
    y = jax.block_until_ready(correlation_matrix_memory_forward(x, weight))
    y_ref = jnp.einsum("bso,oi->bsi", x, weight)
    assert y.shape == (batch, seq, in_features)
    assert jnp.allclose(y, y_ref, atol=1e-5, rtol=1e-5)

    # Ragged-M path (M = 21, not a multiple of the sublane tile): exercises the
    # no-pad / Pallas-masked-tail handling.
    x_ragged = jax.random.normal(k_r, (3, 7, out_features), dtype=jnp.float32)
    y_ragged = jax.block_until_ready(
        correlation_matrix_memory_forward(x_ragged, weight)
    )
    y_ragged_ref = jnp.einsum("bso,oi->bsi", x_ragged, weight)
    assert jnp.allclose(y_ragged, y_ragged_ref, atol=1e-5, rtol=1e-5)

    # bf16 compute path (v6e/v7x MXU-friendly): f32 accumulation, f32 output.
    y_bf16 = jax.block_until_ready(
        correlation_matrix_memory_forward(x, weight, compute_dtype=jnp.bfloat16)
    )
    y_bf16_ref = jnp.einsum(
        "bso,oi->bsi",
        x.astype(jnp.bfloat16).astype(jnp.float32),
        weight.astype(jnp.bfloat16).astype(jnp.float32),
    )
    assert y_bf16.dtype == jnp.float32
    assert jnp.allclose(y_bf16, y_bf16_ref, atol=1e-2, rtol=1e-2)

    # Sanity-check the original zero-init behaviour (forward of a freshly
    # reset module returns zeros).
    y_zero = jax.block_until_ready(
        correlation_matrix_memory_forward(
            x, jnp.zeros((out_features, in_features), dtype=jnp.float32)
        )
    )
    assert jnp.all(y_zero == 0.0)

    print("KERNEL_OK")
</pallas_src>

<mosaic_0001>
module attributes {stable_mosaic.version = 11 : i64} {
  func.func @_cmm_forward_kernel(%arg0: i32, %arg1: memref<16x32xf32, #tpu.memory_space<vmem>>, %arg2: memref<32x64xf32, #tpu.memory_space<vmem>>, %arg3: memref<16x64xf32, #tpu.memory_space<vmem>>) attributes {dimension_semantics = [#tpu.dimension_semantics<parallel>], iteration_bounds = array<i64: 1>, scalar_prefetch = 0 : i64, scratch_operands = 0 : i64, tpu.core_type = #tpu.core_type<tc>, window_params = [{transform_indices = @transform_0, window_bounds = array<i64: 16, 32>}, {pipeline_mode = #tpu.pipeline_mode<synchronous>, transform_indices = @transform_1, window_bounds = array<i64: 32, 64>}, {transform_indices = @transform_2, window_bounds = array<i64: 16, 64>}]} {
    %c0 = arith.constant 0 : index
    %c0_0 = arith.constant 0 : index
    %0 = vector.load %arg1[%c0, %c0_0] : memref<16x32xf32, #tpu.memory_space<vmem>>, vector<16x32xf32>
    %c0_1 = arith.constant 0 : index
    %c0_2 = arith.constant 0 : index
    %1 = vector.load %arg2[%c0_1, %c0_2] : memref<32x64xf32, #tpu.memory_space<vmem>>, vector<32x64xf32>
    %cst = arith.constant dense<0.000000e+00> : vector<16x64xf32>
    %2 = tpu.matmul %0, %1, %cst {dimension_numbers = #tpu.dot_dimension_numbers<[1], [0], [0], [1], [0, 0, 1, 1], [], []>} : vector<16x32xf32>, vector<32x64xf32>, vector<16x64xf32> -> vector<16x64xf32>
    %c0_3 = arith.constant 0 : index
    %c0_4 = arith.constant 0 : index
    %3 = vector.load %arg3[%c0_3, %c0_4] : memref<16x64xf32, #tpu.memory_space<vmem>>, vector<16x64xf32>
    tpu.vector_store %arg3[%c0_3, %c0_4], %2 {strides = array<i32>} : memref<16x64xf32, #tpu.memory_space<vmem>>, vector<16x64xf32>,
    return
  }
  func.func @transform_0(%arg0: i32) -> (i32, i32) {
    %c0_i32 = arith.constant 0 : i32
    %c0_i32_0 = arith.constant 0 : i32
    return %arg0, %c0_i32 : i32, i32
  }
  func.func @transform_1(%arg0: i32) -> (i32, i32) {
    %c0_i32 = arith.constant 0 : i32
    %c0_i32_0 = arith.constant 0 : i32
    %c0_i32_1 = arith.constant 0 : i32
    return %c0_i32, %c0_i32_0 : i32, i32
  }
  func.func @transform_2(%arg0: i32) -> (i32, i32) {
    %c0_i32 = arith.constant 0 : i32
    %c0_i32_0 = arith.constant 0 : i32
    return %arg0, %c0_i32 : i32, i32
  }
}

</mosaic_0001>

<llo_original>
// kernel: correlation_matrix_memory_forward.1
$region0: #{correlation_matrix_memory_forward.1}
  #allocation0 [shape = 'u32[]', space=smem, size = 0x4, offset = 0x4, fixed_abs, tag = 'smem constant byte address 0x4 - core index']
  #allocation1 [shape = 'u32[144,128]{1,0:T(1,128)}', space=vmem, size = 0x12000, scoped, tag = 'internal scratch']
  %s0 = inlined_call_operand.hbm [shape: f32[16,32], index: 0, kind: input, shape index: {}]
  %s1 = inlined_call_operand.hbm [shape: f32[32,64], index: 1, kind: input, shape index: {}]
  %s2 = inlined_call_operand.hbm [shape: f32[16,64], index: 2, kind: output, shape index: {}]
  %s3 = sld [smem:[#allocation0]]
  $region26: #{correlation_matrix_memory_forward.1} parent=0
    _
  %s5 = ssub.s32 1, %s3
  %s6 = scalar_select 0, %s5, %s3
  $region1: #{correlation_matrix_memory_forward.1} parent=0
    #allocation2 [shape = 'u8[8192]{0}', space=vmem, size = 0x2000, scoped, tag = 'input window, operand 0, single buffered']
    #allocation3 [shape = 's32[1]{0}', space=sflag, size = 0x4, scoped, tag = 'scoped memory for correlation_matrix_memory_forward.1']
    #allocation4 [shape = 's32[1]{0}', space=sflag, size = 0x4, scoped, tag = 'scoped memory for correlation_matrix_memory_forward.1']
    #allocation5 [shape = 'u8[16384]{0}', space=vmem, size = 0x4000, scoped, tag = 'input window, operand 1, single buffered']
    #allocation6 [shape = 's32[1]{0}', space=sflag, size = 0x4, scoped, tag = 'scoped memory for correlation_matrix_memory_forward.1']
    #allocation7 [shape = 'u8[8192]{0}', space=vmem, size = 0x2000, scoped, tag = 'output window, operand 0, single buffered']
    %7 = vsyncpa [#allocation3], 0
    %8 = vsyncpa [#allocation6], 0
    %9 = vsyncpa [#allocation4], 0
    // Predicated region
    $region2: #{correlation_matrix_memory_forward.1} parent=1 // pred_check
      _
    $region3: #{correlation_matrix_memory_forward.1} parent=1 // pred_check_branch
      %11 = sbr.rel (0) target = $region5
    $region4: #{correlation_matrix_memory_forward.1} parent=1 // pred_region
      %s13 = ssub.s32 256, 256
      %14 = vsyncadd [#allocation3], %s13
      %s15 = sshll.u32 [#allocation2], 4
      %s16 = int_to_ptr.vmem [resolvable:$true] %s15
      %21 = dma.hbm_to_vmem [thread:$0]  %s0, 256, %s16, [#allocation3], 128, 128, 8
    $region5: #{correlation_matrix_memory_forward.1} parent=1 // pred_fallthru
      _
    // Predicated region
    $region6: #{correlation_matrix_memory_forward.1} parent=1 // pred_check
      _
    $region7: #{correlation_matrix_memory_forward.1} parent=1 // pred_check_branch
      %23 = sbr.rel (0) target = $region9
    $region8: #{correlation_matrix_memory_forward.1} parent=1 // pred_region
      %s25 = ssub.s32 512, 512
      %26 = vsyncadd [#allocation6], %s25
      %s27 = sshll.u32 [#allocation5], 4
      %s28 = int_to_ptr.vmem [resolvable:$true] %s27
      %33 = dma.hbm_to_vmem [thread:$0]  %s1, 512, %s28, [#allocation6], 128, 128, 8
    $region9: #{correlation_matrix_memory_forward.1} parent=1 // pred_fallthru
      _
    // Predicated region
    $region10: #{correlation_matrix_memory_forward.1} parent=1 // pred_check
      _
    $region11: #{correlation_matrix_memory_forward.1} parent=1 // pred_check_branch
      %35 = sbr.rel (0) target = $region13
    $region12: #{correlation_matrix_memory_forward.1} parent=1 // pred_region
      %36 = dma.done [#allocation3], 256
    $region13: #{correlation_matrix_memory_forward.1} parent=1 // pred_fallthru
      _
    // Predicated region
    $region14: #{correlation_matrix_memory_forward.1} parent=1 // pred_check
      _
    $region15: #{correlation_matrix_memory_forward.1} parent=1 // pred_check_branch
      %38 = sbr.rel (0) target = $region17
    $region16: #{correlation_matrix_memory_forward.1} parent=1 // pred_region
      %39 = dma.done [#allocation6], 512
    $region17: #{correlation_matrix_memory_forward.1} parent=1 // pred_fallthru
      _
    %v40 = vld [vmem:[#allocation2] sm:$0xff]
    %v41 = vld [vmem:[#allocation2 + $0x8] sm:$0xff]
    %v42 = vld [vmem:[#allocation5] sm:$0xff]
    %v43 = vld [vmem:[#allocation5 + $0x8] sm:$0xff]
    %v44 = vld [vmem:[#allocation5 + $0x10] sm:$0xff]
    %v45 = vld [vmem:[#allocation5 + $0x18] sm:$0xff]
    %vm46 = vcmask 261120
    %v48 = vsel %vm46, %v40, 0
    %v51 = vsel %vm46, %v41, 0
    %53 = vmatprep.subr.mxu0 0.0
    %54 = vmatpush1.msra.mxu0 0.0
    %55 = vmatprep.subr.mxu0 0.0
    %56 = vmatpush1.msra.mxu0 0.0
    %57 = vmatprep.subr.mxu0 0.0
    %58 = vmatpush1.msra.mxu0 0.0
    %59 = vmatprep.subr.mxu0 0.0
    %60 = vmatpush1.msra.mxu0 0.0
    %61 = vmatprep.subr.mxu0 0.0
    %62 = vmatpush1.msra.mxu0 0.0
    %63 = vmatprep.subr.mxu0 0.0
    %64 = vmatpush1.msra.mxu0 0.0
    %65 = vmatprep.subr.mxu0 0.0
    %66 = vmatpush1.msra.mxu0 0.0
    %67 = vmatprep.subr.mxu0 0.0
    %68 = vmatpush1.msra.mxu0 0.0
    %69 = vmatprep.subr.mxu0 0.0
    %70 = vmatpush1.msra.mxu0 0.0
    %71 = vmatprep.subr.mxu0 0.0
    %72 = vmatpush1.msra.mxu0 0.0
    %73 = vmatprep.subr.mxu0 0.0
    %74 = vmatpush1.msra.mxu0 0.0
    %75 = vmatprep.subr.mxu0 0.0
    %76 = vmatpush1.msra.mxu0 0.0
    %77 = vmatprep.subr.mxu0 0.0
    %78 = vmatpush1.msra.mxu0 %v45
    %79 = vmatprep.subr.mxu0 0.0
    %80 = vmatpush1.msra.mxu0 %v44
    %81 = vmatprep.subr.mxu0 0.0
    %82 = vmatpush1.msra.mxu0 %v43
    %83 = vmatprep.subr.mxu0 0.0
    %84 = vmatpush1.msra.mxu0 %v42
    %85 = vmatprep.subr.mxu0 0.0
    %86 = vmatpush2.msra.mxu0 0.0
    %87 = vmatprep.subr.mxu0 0.0
    %88 = vmatpush2.msra.mxu0 0.0
    %89 = vmatprep.subr.mxu0 0.0
    %90 = vmatpush2.msra.mxu0 0.0
    %91 = vmatprep.subr.mxu0 0.0
    %92 = vmatpush2.msra.mxu0 0.0
    %93 = vmatprep.subr.mxu0 0.0
    %94 = vmatpush2.msra.mxu0 0.0
    %95 = vmatprep.subr.mxu0 0.0
    %96 = vmatpush2.msra.mxu0 0.0
    %97 = vmatprep.subr.mxu0 0.0
    %98 = vmatpush2.msra.mxu0 0.0
    %99 = vmatprep.subr.mxu0 0.0
    %100 = vmatpush2.msra.mxu0 0.0
    %101 = vmatprep.subr.mxu0 0.0
    %102 = vmatpush2.msra.mxu0 0.0
    %103 = vmatprep.subr.mxu0 0.0
    %104 = vmatpush2.msra.mxu0 0.0
    %105 = vmatprep.subr.mxu0 0.0
    %106 = vmatpush2.msra.mxu0 0.0
    %107 = vmatprep.subr.mxu0 0.0
    %108 = vmatpush2.msra.mxu0 0.0
    %109 = vmatprep.subr.mxu0 0.0
    %110 = vmatpush2.msra.mxu0 0.0
    %111 = vmatprep.subr.mxu0 0.0
    %112 = vmatpush2.msra.mxu0 0.0
    %113 = vmatprep.subr.mxu0 0.0
    %114 = vmatpush2.msra.mxu0 0.0
    %115 = vmatprep.subr.mxu0 0.0
    %116 = vmatpush2.msra.mxu0 0.0
    %117 = vmatprep.mubr.f32.mxu0 0.0
    %118 = vmatmul.mubr.f32.gmra.mxu0 %v48
    %v119 = vpop.f32.mrf.mxu0
    %v120 = vadd.f32 0.0, %v119
    %v121 = vpop.f32.mrf.mxu0
    %122 = vmatprep.mubr.f32.mxu0 0.0
    %123 = vmatmul.mubr.f32.gmra.mxu0 %v51
    %v124 = vpop.f32.mrf.mxu0
    %v125 = vadd.f32 0.0, %v124
    %v126 = vpop.f32.mrf.mxu0
    %127 = vdwg.mxu0
    %vm128 = vcmask 523264
    %129 = vst.msk [vmem:[#allocation7] sm:$0xff] %vm128, %v120
    %130 = vst.msk [vmem:[#allocation7 + $0x8] sm:$0xff] %vm128, %v125
    // Predicated region
    $region18: #{correlation_matrix_memory_forward.1} parent=1 // pred_check
      _
    $region19: #{correlation_matrix_memory_forward.1} parent=1 // pred_check_branch
      %132 = sbr.rel (0) target = $region21
    $region20: #{correlation_matrix_memory_forward.1} parent=1 // pred_region
      %s134 = ssub.s32 256, 256
      %135 = vsyncadd [#allocation4], %s134
      %s136 = sshll.u32 [#allocation7], 4
      %s137 = int_to_ptr.vmem [resolvable:$true] %s136
      %142 = dma.vmem_to_hbm [thread:$0]  %s137, 256, %s2, [#allocation4], 128, 128, 8
    $region21: #{correlation_matrix_memory_forward.1} parent=1 // pred_fallthru
      _
    // Predicated region
    $region22: #{correlation_matrix_memory_forward.1} parent=1 // pred_check
      _
    $region23: #{correlation_matrix_memory_forward.1} parent=1 // pred_check_branch
      %144 = sbr.rel (0) target = $region25
    $region24: #{correlation_matrix_memory_forward.1} parent=1 // pred_region
      %145 = dma.done [#allocation4], 256
    $region25: #{correlation_matrix_memory_forward.1} parent=1 // pred_fallthru
      _
    %146 = vsyncpa [#allocation3], 1
    %147 = vsyncpa [#allocation6], 1
    %148 = vsyncpa [#allocation4], 1

</llo_original>
